<compile_context>
chip_gen: v7x
topology: tpu7x:2x2x1
jax: 0.10.0
libtpu: 0.0.40
codegen_flags: <defaults>
</compile_context>

<pallas_src>
import functools

import jax
import jax.numpy as jnp
from jax.experimental import pallas as pl
from jax.experimental.pallas import tpu as pltpu


# ----------------------------- kernels --------------------------------------


def _conv_stats_kernel(w_ref, p_ref, y_ref, psum_ref, psumsq_ref):
    """Pass 1: conv matmul tile + lane-partial BN statistics.

    w_ref:    (OC, K)       resident weights (compute dtype)
    p_ref:    (1, K, TM)    streamed im2col patch tile (compute dtype)
    y_ref:    (1, OC, TM)   conv output tile (compute dtype, lane-dense)
    psum_ref / psumsq_ref: (1, 1, OC, 128)  lane-partial sum / sum-of-squares (f32)
    """
    y = jnp.dot(w_ref[...], p_ref[0], preferred_element_type=jnp.float32)
    y_ref[0] = y.astype(y_ref.dtype)
    oc, tm = y.shape
    s = jnp.zeros((oc, 128), jnp.float32)
    ss = jnp.zeros((oc, 128), jnp.float32)
    for c0 in range(0, tm, 128):            # static unroll; pure VPU adds
        blk = y[:, c0:c0 + 128]
        s = s + blk
        ss = ss + blk * blk
    psum_ref[0, 0] = s
    psumsq_ref[0, 0] = ss


def _bn_apply_kernel(a_ref, b_ref, y_ref, o_ref):
    """Pass 2: folded BatchNorm affine, one FMA/element, NCHW-layout store."""
    a = a_ref[:, 0:1]                       # (OC, 1) f32
    b = b_ref[:, 0:1]
    y = y_ref[0].astype(jnp.float32)        # (OC, TM)
    o_ref[0] = (y * a + b).astype(o_ref.dtype)


def _fused_conv_bn_kernel(w_ref, p_ref, g_ref, bt_ref, o_ref, *, eps):
    """Single-kernel fast path: conv + exact two-pass BN stats + affine.

    w_ref: (OC, K); p_ref: (N, K, OHW); g_ref/bt_ref: (OC, 1) f32;
    o_ref: (N, OC, OHW) f32.  Everything resident in VMEM.
    """
    n_img, _, ohw = p_ref.shape
    oc = w_ref.shape[0]
    count = float(n_img * ohw)

    ys = []
    s = jnp.zeros((oc, 1), jnp.float32)
    for i in range(n_img):
        y = jnp.dot(w_ref[...], p_ref[i], preferred_element_type=jnp.float32)
        ys.append(y)
        s = s + jnp.sum(y, axis=1, keepdims=True)
    mean = s / count

    v = jnp.zeros((oc, 1), jnp.float32)
    for i in range(n_img):
        d = ys[i] - mean
        v = v + jnp.sum(d * d, axis=1, keepdims=True)
    var = v / count

    a = g_ref[...] * jax.lax.rsqrt(var + eps)
    b = bt_ref[...] - mean * a
    for i in range(n_img):
        o_ref[i] = (ys[i] * a + b).astype(o_ref.dtype)


# ----------------------------- wrapper ---------------------------------------


def _round_up(x, m):
    return (x + m - 1) // m * m


def _vmem_capacity_bytes():
    try:
        return int(pltpu.get_tpu_info().vmem_capacity_bytes)
    except Exception:
        return 64 << 20          # conservative default, valid on v5e/v6e/v7x


def _im2col_per_image(x, kh, kw, stride, padding, dilation):
    """NCHW -> (N, C*KH*KW, OH*OW).  K order (c, kh, kw) matches weight.reshape."""
    n, c, h, w = x.shape
    xp = jnp.pad(x, ((0, 0), (0, 0), (padding, padding), (padding, padding)))
    oh = (h + 2 * padding - dilation * (kh - 1) - 1) // stride + 1
    ow = (w + 2 * padding - dilation * (kw - 1) - 1) // stride + 1
    cols = []
    for i in range(kh):
        for j in range(kw):
            cols.append(xp[:, :,
                           i * dilation: i * dilation + stride * oh: stride,
                           j * dilation: j * dilation + stride * ow: stride])
    p = jnp.stack(cols, axis=2)             # (N, C, KH*KW, OH, OW)
    return p.reshape(n, c * kh * kw, oh * ow), oh, ow


def conv_bn_forward(x, weight, gamma, beta, *, stride=1, padding=0, dilation=1,
                    groups=1, eps=1e-5, tile_m=None,
                    compute_dtype=jnp.bfloat16, fused=None):
    """x: (N, C, H, W) f32; weight: (OC, C/groups, KH, KW).  groups must be 1."""
    assert groups == 1  # TODO(synk): grouped conv not implemented in this kernel
    n, c, h, w = x.shape
    oc, _, kh, kw = weight.shape

    # TODO(synk): fold patch extraction into the pass-1 kernel (halo-aware
    # shifted-window reads of the padded NCHW input) to remove the ~KH*KW-fold
    # HBM read inflation of the materialized im2col.
    p, oh, ow = _im2col_per_image(x, kh, kw, stride, padding, dilation)
    _, k, ohw = p.shape
    p = p.astype(compute_dtype)
    w_mat = weight.reshape(oc, k).astype(compute_dtype)
    gamma2 = gamma.astype(jnp.float32).reshape(oc, 1)
    beta2 = beta.astype(jnp.float32).reshape(oc, 1)

    itemsize = jnp.dtype(compute_dtype).itemsize
    vmem_cap = _vmem_capacity_bytes()
    # 3/4 of physical VMEM, capped: ~48 MiB on v7x (64 MiB), 96 MiB on v5e/v6e.
    vmem_limit = int(min(vmem_cap * 3 // 4, 96 << 20))

    # --- Fused single-kernel fast path ---------------------------------------
    w_bytes = oc * k * itemsize
    p_bytes = n * k * ohw * itemsize
    y_bytes = n * oc * ohw * 4
    if fused is None:
        fused = 2 * (p_bytes + w_bytes + 3 * y_bytes) <= vmem_limit
    if fused:
        out_flat = pl.pallas_call(
            functools.partial(_fused_conv_bn_kernel, eps=eps),
            out_shape=jax.ShapeDtypeStruct((n, oc, ohw), jnp.float32),
            compiler_params=pltpu.CompilerParams(vmem_limit_bytes=vmem_limit),
        )(w_mat, p, gamma2, beta2)
        return out_flat.reshape(n, oc, oh, ow)

    # --- Tiled two-pass path --------------------------------------------------
    if tile_m is None:
        # Double-buffered streamed bytes per output column across both passes;
        # budget half the VMEM limit minus two resident weight copies (one per
        # TensorCore when the grid is sharded across cores).
        per_col = 2 * (k * itemsize + oc * itemsize) + 2 * (oc * itemsize + oc * 4)
        budget = max(vmem_limit // 2 - 2 * w_bytes, 2 << 20)
        tile_m = (budget // per_col) // 128 * 128
        tile_m = int(max(128, min(tile_m, 4096)))
    assert tile_m % 128 == 0
    tile_m = min(tile_m, _round_up(ohw, 128))
    ohw_pad = _round_up(ohw, tile_m)
    t_tiles = ohw_pad // tile_m
    if ohw_pad != ohw:
        # Zero patch columns -> zero conv outputs: they add nothing to the
        # partial sums; the true element count is used for mean/var below and
        # the padded output columns are sliced off at the end.
        p = jnp.pad(p, ((0, 0), (0, 0), (0, ohw_pad - ohw)))

    # Pass 1: conv matmul + lane-partial BN statistics per (image, tile).
    y, psum, psumsq = pl.pallas_call(
        _conv_stats_kernel,
        out_shape=(
            jax.ShapeDtypeStruct((n, oc, ohw_pad), compute_dtype),
            jax.ShapeDtypeStruct((n, t_tiles, oc, 128), jnp.float32),
            jax.ShapeDtypeStruct((n, t_tiles, oc, 128), jnp.float32),
        ),
        grid=(n, t_tiles),
        in_specs=[
            pl.BlockSpec((oc, k), lambda ni, ti: (0, 0)),            # resident
            pl.BlockSpec((1, k, tile_m), lambda ni, ti: (ni, 0, ti)),  # streamed
        ],
        out_specs=(
            pl.BlockSpec((1, oc, tile_m), lambda ni, ti: (ni, 0, ti)),
            pl.BlockSpec((1, 1, oc, 128), lambda ni, ti: (ni, ti, 0, 0)),
            pl.BlockSpec((1, 1, oc, 128), lambda ni, ti: (ni, ti, 0, 0)),
        ),
        compiler_params=pltpu.CompilerParams(
            dimension_semantics=("parallel", "parallel"),
            vmem_limit_bytes=vmem_limit,
        ),
    )(w_mat, p)

    # Combine tiny per-tile partials and fold the BN affine (wrapper-side).
    # TODO(synk): running_mean / running_var momentum updates are not emitted.
    # TODO(synk): switch to shifted/Welford partials if |mean| >> std at huge M.
    count = jnp.float32(n * ohw)
    mean = jnp.sum(psum, axis=(0, 1, 3)) / count                     # (OC,)
    var = jnp.maximum(jnp.sum(psumsq, axis=(0, 1, 3)) / count - mean * mean, 0.0)
    a_vec = gamma2[:, 0] * jax.lax.rsqrt(var + eps)
    b_vec = beta2[:, 0] - mean * a_vec
    a2 = jnp.broadcast_to(a_vec.reshape(oc, 1), (oc, 128))           # lane-dense
    b2 = jnp.broadcast_to(b_vec.reshape(oc, 1), (oc, 128))

    # Pass 2: one FMA/elem; writes the (N, OC, OH*OW) NCHW result directly.
    out = pl.pallas_call(
        _bn_apply_kernel,
        out_shape=jax.ShapeDtypeStruct((n, oc, ohw_pad), jnp.float32),
        grid=(n, t_tiles),
        in_specs=[
            pl.BlockSpec((oc, 128), lambda ni, ti: (0, 0)),
            pl.BlockSpec((oc, 128), lambda ni, ti: (0, 0)),
            pl.BlockSpec((1, oc, tile_m), lambda ni, ti: (ni, 0, ti)),
        ],
        out_specs=pl.BlockSpec((1, oc, tile_m), lambda ni, ti: (ni, 0, ti)),
        compiler_params=pltpu.CompilerParams(
            dimension_semantics=("parallel", "parallel"),
            vmem_limit_bytes=vmem_limit,
        ),
    )(a2, b2, y)

    if ohw_pad != ohw:
        out = out[:, :, :ohw]
    return out.reshape(n, oc, oh, ow)


# ----------------------------- reference & test ------------------------------


def conv_bn_reference(x, weight, gamma, beta, *, stride=1, padding=0,
                      dilation=1, eps=1e-5):
    y = jax.lax.conv_general_dilated(
        x, weight, window_strides=(stride, stride),
        padding=[(padding, padding), (padding, padding)],
        rhs_dilation=(dilation, dilation),
        dimension_numbers=("NCHW", "OIHW", "NCHW"))
    mean = jnp.mean(y, axis=(0, 2, 3), keepdims=True)
    var = jnp.mean((y - mean) ** 2, axis=(0, 2, 3), keepdims=True)
    g = gamma.reshape(1, -1, 1, 1)
    b = beta.reshape(1, -1, 1, 1)
    return (y - mean) * jax.lax.rsqrt(var + eps) * g + b


if __name__ == "__main__":
    # ConvBn(in_channel=4, out_channel=8, kernel_size=3, stride=1, padding=1)
    in_channel, out_channel, kernel_size = 4, 8, 3

    key = jax.random.PRNGKey(0)
    kx, kw_, kg, kb = jax.random.split(key, 4)
    x = jax.random.normal(kx, (2, in_channel, 16, 16), dtype=jnp.float32)
    weight = 0.1 * jax.random.normal(
        kw_, (out_channel, in_channel, kernel_size, kernel_size),
        dtype=jnp.float32)
    gamma = 1.0 + 0.1 * jax.random.normal(kg, (out_channel,), dtype=jnp.float32)
    beta = 0.1 * jax.random.normal(kb, (out_channel,), dtype=jnp.float32)

    # Test 1: tiled two-pass path, bf16 MXU operands, multi-tile statistics
    # (OH*OW = 256, tile_m = 128 -> 2 spatial tiles per image, grid (2, 2)).
    out1 = conv_bn_forward(x, weight, gamma, beta, stride=1, padding=1,
                           tile_m=128, fused=False)
    out1 = jax.block_until_ready(out1)
    ref1 = conv_bn_reference(x, weight, gamma, beta, stride=1, padding=1)
    assert out1.shape == (2, out_channel, 16, 16)
    assert jnp.allclose(out1, ref1, atol=3e-2, rtol=3e-2), \
        float(jnp.max(jnp.abs(out1 - ref1)))

    # Test 2: tiled path with stride=2 / zero-padded tile columns, f32 compute.
    out2 = conv_bn_forward(x, weight, gamma, beta, stride=2, padding=0,
                           compute_dtype=jnp.float32, fused=False)
    out2 = jax.block_until_ready(out2)
    ref2 = conv_bn_reference(x, weight, gamma, beta, stride=2, padding=0)
    assert out2.shape == (2, out_channel, 7, 7)
    assert jnp.allclose(out2, ref2, atol=1e-4, rtol=1e-4), \
        float(jnp.max(jnp.abs(out2 - ref2)))

    # Test 3: fused single-kernel fast path (auto-selected at this size).
    out3 = conv_bn_forward(x, weight, gamma, beta, stride=1, padding=1)
    out3 = jax.block_until_ready(out3)
    assert out3.shape == (2, out_channel, 16, 16)
    assert jnp.allclose(out3, ref1, atol=3e-2, rtol=3e-2), \
        float(jnp.max(jnp.abs(out3 - ref1)))

    print("KERNEL_OK")
</pallas_src>

<mosaic_0001>
module attributes {stable_mosaic.version = 11 : i64} {
  func.func @_conv_stats_kernel(%arg0: i32, %arg1: i32, %arg2: memref<8x36xbf16, #tpu.memory_space<vmem>>, %arg3: memref<1x36x128xbf16, #tpu.memory_space<vmem>>, %arg4: memref<1x8x128xbf16, #tpu.memory_space<vmem>>, %arg5: memref<1x1x8x128xf32, #tpu.memory_space<vmem>>, %arg6: memref<1x1x8x128xf32, #tpu.memory_space<vmem>>) attributes {dimension_semantics = [#tpu.dimension_semantics<parallel>, #tpu.dimension_semantics<parallel>], iteration_bounds = array<i64: 2, 2>, scalar_prefetch = 0 : i64, scratch_operands = 0 : i64, tpu.core_type = #tpu.core_type<tc>, window_params = [{pipeline_mode = #tpu.pipeline_mode<synchronous>, transform_indices = @transform_0, window_bounds = array<i64: 8, 36>}, {transform_indices = @transform_1, window_bounds = array<i64: 1, 36, 128>}, {transform_indices = @transform_2, window_bounds = array<i64: 1, 8, 128>}, {transform_indices = @transform_3, window_bounds = array<i64: 1, 1, 8, 128>}, {transform_indices = @transform_4, window_bounds = array<i64: 1, 1, 8, 128>}]} {
    %c0 = arith.constant 0 : index
    %c0_0 = arith.constant 0 : index
    %0 = vector.load %arg2[%c0, %c0_0] : memref<8x36xbf16, #tpu.memory_space<vmem>>, vector<8x36xbf16>
    %c0_1 = arith.constant 0 : index
    %c0_2 = arith.constant 0 : index
    %c0_3 = arith.constant 0 : index
    %1 = vector.load %arg3[%c0_1, %c0_2, %c0_3] : memref<1x36x128xbf16, #tpu.memory_space<vmem>>, vector<1x36x128xbf16>
    %2 = vector.shape_cast %1 : vector<1x36x128xbf16> to vector<36x128xbf16>
    %cst = arith.constant dense<0.000000e+00> : vector<8x128xf32>
    %3 = tpu.matmul %0, %2, %cst {dimension_numbers = #tpu.dot_dimension_numbers<[1], [0], [0], [1], [0, 0, 1, 1], [], []>} : vector<8x36xbf16>, vector<36x128xbf16>, vector<8x128xf32> -> vector<8x128xf32>
    %4 = arith.truncf %3 : vector<8x128xf32> to vector<8x128xbf16>
    %c0_4 = arith.constant 0 : index
    %c0_5 = arith.constant 0 : index
    %c0_6 = arith.constant 0 : index
    %5 = vector.load %arg4[%c0_4, %c0_5, %c0_6] : memref<1x8x128xbf16, #tpu.memory_space<vmem>>, vector<1x8x128xbf16>
    %6 = vector.shape_cast %5 : vector<1x8x128xbf16> to vector<8x128xbf16>
    %7 = vector.shape_cast %4 : vector<8x128xbf16> to vector<1x8x128xbf16>
    tpu.vector_store %arg4[%c0_4, %c0_5, %c0_6], %7 {strides = array<i32>} : memref<1x8x128xbf16, #tpu.memory_space<vmem>>, vector<1x8x128xbf16>,
    %cst_7 = arith.constant 0.000000e+00 : f32
    %8 = vector.broadcast %cst_7 : f32 to vector<8x128xf32>
    %cst_8 = arith.constant 0.000000e+00 : f32
    %9 = vector.broadcast %cst_8 : f32 to vector<8x128xf32>
    %10 = arith.addf %8, %3 : vector<8x128xf32>
    %11 = arith.mulf %3, %3 : vector<8x128xf32>
    %12 = arith.addf %9, %11 : vector<8x128xf32>
    %c0_9 = arith.constant 0 : index
    %c0_10 = arith.constant 0 : index
    %c0_11 = arith.constant 0 : index
    %c0_12 = arith.constant 0 : index
    %13 = vector.load %arg5[%c0_9, %c0_10, %c0_11, %c0_12] : memref<1x1x8x128xf32, #tpu.memory_space<vmem>>, vector<1x1x8x128xf32>
    %14 = vector.shape_cast %13 : vector<1x1x8x128xf32> to vector<8x128xf32>
    %15 = vector.shape_cast %10 : vector<8x128xf32> to vector<1x1x8x128xf32>
    tpu.vector_store %arg5[%c0_9, %c0_10, %c0_11, %c0_12], %15 {strides = array<i32>} : memref<1x1x8x128xf32, #tpu.memory_space<vmem>>, vector<1x1x8x128xf32>,
    %c0_13 = arith.constant 0 : index
    %c0_14 = arith.constant 0 : index
    %c0_15 = arith.constant 0 : index
    %c0_16 = arith.constant 0 : index
    %16 = vector.load %arg6[%c0_13, %c0_14, %c0_15, %c0_16] : memref<1x1x8x128xf32, #tpu.memory_space<vmem>>, vector<1x1x8x128xf32>
    %17 = vector.shape_cast %16 : vector<1x1x8x128xf32> to vector<8x128xf32>
    %18 = vector.shape_cast %12 : vector<8x128xf32> to vector<1x1x8x128xf32>
    tpu.vector_store %arg6[%c0_13, %c0_14, %c0_15, %c0_16], %18 {strides = array<i32>} : memref<1x1x8x128xf32, #tpu.memory_space<vmem>>, vector<1x1x8x128xf32>,
    return
  }
  func.func @transform_0(%arg0: i32, %arg1: i32) -> (i32, i32) {
    %c0_i32 = arith.constant 0 : i32
    %c0_i32_0 = arith.constant 0 : i32
    %c0_i32_1 = arith.constant 0 : i32
    return %c0_i32, %c0_i32_0 : i32, i32
  }
  func.func @transform_1(%arg0: i32, %arg1: i32) -> (i32, i32, i32) {
    %c0_i32 = arith.constant 0 : i32
    %c0_i32_0 = arith.constant 0 : i32
    return %arg0, %c0_i32, %arg1 : i32, i32, i32
  }
  func.func @transform_2(%arg0: i32, %arg1: i32) -> (i32, i32, i32) {
    %c0_i32 = arith.constant 0 : i32
    %c0_i32_0 = arith.constant 0 : i32
    return %arg0, %c0_i32, %arg1 : i32, i32, i32
  }
  func.func @transform_3(%arg0: i32, %arg1: i32) -> (i32, i32, i32, i32) {
    %c0_i32 = arith.constant 0 : i32
    %c0_i32_0 = arith.constant 0 : i32
    %c0_i32_1 = arith.constant 0 : i32
    return %arg0, %arg1, %c0_i32, %c0_i32_0 : i32, i32, i32, i32
  }
  func.func @transform_4(%arg0: i32, %arg1: i32) -> (i32, i32, i32, i32) {
    %c0_i32 = arith.constant 0 : i32
    %c0_i32_0 = arith.constant 0 : i32
    %c0_i32_1 = arith.constant 0 : i32
    return %arg0, %arg1, %c0_i32, %c0_i32_0 : i32, i32, i32, i32
  }
}

</mosaic_0001>

<llo_original>
// kernel: tpu_custom_call.1
$region0: #{tpu_custom_call.1}
  #allocation0 [shape = 'u32[]', space=smem, size = 0x4, offset = 0x4, fixed_abs, tag = 'smem constant byte address 0x4 - core index']
  #allocation1 [shape = 'u32[144,128]{1,0:T(1,128)}', space=vmem, size = 0x12000, scoped, tag = 'internal scratch']
  %s0 = inlined_call_operand.vmem [shape: bf16[8,36], index: 0, kind: input, shape index: {}]
  %s1 = inlined_call_operand.vmem [shape: bf16[2,36,256], index: 1, kind: input, shape index: {}]
  %s2 = inlined_call_operand.hbm [shape: bf16[2,8,256], index: 2, kind: output, shape index: {0}]
  %s3 = inlined_call_operand.hbm [shape: f32[2,2,8,128], index: 3, kind: output, shape index: {1}]
  %s4 = inlined_call_operand.hbm [shape: f32[2,2,8,128], index: 4, kind: output, shape index: {2}]
  %5 = xla_tuple %s2, %s3, %s4
  %s6 = sld [smem:[#allocation0]]
  $region98: #{tpu_custom_call.1} parent=0
    _
  %s8 = ssub.s32 1, %s6
  %s9 = scalar_select 0, %s8, %s6
  $region1: #{tpu_custom_call.1} parent=0
    #allocation2 [shape = 'u8[20480]{0}', space=vmem, size = 0x5000, scoped, tag = 'input window, operand 1']
    #allocation3 [shape = 'u8[4096]{0}', space=vmem, size = 0x1000, scoped, tag = 'output window, operand 0']
    #allocation4 [shape = 's32[2]{0}', space=sflag, size = 0x8, scoped, tag = 'scoped memory for tpu_custom_call.1']
    #allocation5 [shape = 'u8[8192]{0}', space=vmem, size = 0x2000, scoped, tag = 'output window, operand 1']
    #allocation6 [shape = 's32[2]{0}', space=sflag, size = 0x8, scoped, tag = 'scoped memory for tpu_custom_call.1']
    #allocation7 [shape = 'u8[8192]{0}', space=vmem, size = 0x2000, scoped, tag = 'output window, operand 2']
    %10 = vsyncpa [#allocation4], 0
    %s11 = scalar_lea.sflag [#allocation4], 1
    %12 = vsyncpa %s11, 0
    %13 = vsyncpa [#allocation6], 0
    %s14 = scalar_lea.sflag [#allocation6], 1
    %15 = vsyncpa %s14, 0
    loop: start=0, step=1, limit=6
    $region2: #{tpu_custom_call.1} parent=1 // loop_pre_header
      _
    $region3: #{tpu_custom_call.1} parent=1 // loop_header
      %s17 = sphi 0, %s21
      %p18 = scmp.ge.s32.totalorder %s17, 6
      %s24 = sphi 0, %s36
      %s25 = sphi 0, %s32
      %s26 = sphi 0, %s24
      %s27 = sphi 0, %s25
      %s28 = sphi 0, %s26
      %s29 = sphi 0, %s27
      %s37 = sphi 0, %s37
      %s39 = sphi 0, %s37
      %s40 = sphi 0, %s39
      %s54 = sphi 0, %s40
      %s62 = sphi 0, %s64
      %s65 = sphi 0, %s62
      %s66 = sphi 0, %s65
      %s82 = sphi 0, %s66
      %s90 = sphi 0, %s92
      %s93 = sphi 0, %s90
      %s94 = sphi 0, %s93
      %s110 = sphi 0, %s94
      %s118 = sphi 0, %s120
      %s121 = sphi 0, %s118
      %s122 = sphi 0, %s121
      %s138 = sphi 0, %s122
      %s146 = sphi 0, %s148
      %s149 = sphi 0, %s146
      %s150 = sphi 0, %s149
      %s166 = sphi 0, %s150
    $region4: #{tpu_custom_call.1} parent=1 // loop_header_branch
      %20 = sbr.rel (%p18) target = $region8
    $region5: #{tpu_custom_call.1} parent=1 // loop_body
      %s22 = ssub.s32 %s17, 1
      %s23 = ssub.s32 %s17, 2
      %s30 = sadd.s32 1, %s25
      %p31 = scmp.ge.s32.totalorder %s30, 2
      %s32 = scalar_select %p31, 0, %s30
      %s33 = sadd.s32 1, %s24
      %s34 = scalar_select %p31, %s33, %s24
      %p35 = scmp.ge.s32.totalorder %s34, 2
      %s36 = scalar_select %p35, 0, %s34
      %s38 = sadd.s32 %s37, 1
      %p41 = scmp.eq.s32.totalorder %s17, 3
      %p42 = scmp.ne.s32.totalorder %s37, %s39
      %p43 = scmp.eq.s32.totalorder %s17, 0
      %p44 = por %p42, %p43
      %p45 = scmp.ne.s32.totalorder %s37, %s39
      %p46 = scmp.eq.s32.totalorder %s22, 3
      %p47 = por %p45, %p46
      %p48 = scmp.ne.s32.totalorder %s39, %s40
      %p49 = scmp.eq.s32.totalorder %s22, 0
      %p50 = por %p48, %p49
      %p51 = scmp.ne.s32.totalorder %s39, %s40
      %p52 = scmp.eq.s32.totalorder %s23, 3
      %p53 = por %p51, %p52
      %p55 = scmp.ne.s32.totalorder %s40, %s54
      %p56 = scmp.eq.s32.totalorder %s23, 0
      %p57 = por %p55, %p56
      %s58 = ssub.s32 %s24, %s36
      %s59 = ssub.s32 %s25, %s32
      %s60 = sor.u32 %s58, %s59
      %p61 = scmp.eq.s32.totalorder %s60, 0
      %s63 = sadd.s32 %s62, 1
      %s64 = scalar_select %p61, %s62, %s63
      %p67 = pneg %p61
      %p68 = scmp.eq.s32.totalorder %s17, 3
      %p69 = por %p67, %p68
      %p70 = scmp.ne.s32.totalorder %s62, %s65
      %p71 = scmp.eq.s32.totalorder %s17, 0
      %p72 = por %p70, %p71
      %p73 = scmp.ne.s32.totalorder %s62, %s65
      %p74 = scmp.eq.s32.totalorder %s22, 3
      %p75 = por %p73, %p74
      %p76 = scmp.ne.s32.totalorder %s65, %s66
      %p77 = scmp.eq.s32.totalorder %s22, 0
      %p78 = por %p76, %p77
      %p79 = scmp.ne.s32.totalorder %s65, %s66
      %p80 = scmp.eq.s32.totalorder %s23, 3
      %p81 = por %p79, %p80
      %p83 = scmp.ne.s32.totalorder %s66, %s82
      %p84 = scmp.eq.s32.totalorder %s23, 0
      %p85 = por %p83, %p84
      %s86 = ssub.s32 %s24, %s36
      %s87 = ssub.s32 %s25, %s32
      %s88 = sor.u32 %s86, %s87
      %p89 = scmp.eq.s32.totalorder %s88, 0
      %s91 = sadd.s32 %s90, 1
      %s92 = scalar_select %p89, %s90, %s91
      %p95 = pneg %p89
      %p96 = scmp.eq.s32.totalorder %s17, 3
      %p97 = por %p95, %p96
      %p98 = scmp.ne.s32.totalorder %s90, %s93
      %p99 = scmp.eq.s32.totalorder %s17, 0
      %p100 = por %p98, %p99
      %p101 = scmp.ne.s32.totalorder %s90, %s93
      %p102 = scmp.eq.s32.totalorder %s22, 3
      %p103 = por %p101, %p102
      %p104 = scmp.ne.s32.totalorder %s93, %s94
      %p105 = scmp.eq.s32.totalorder %s22, 0
      %p106 = por %p104, %p105
      %p107 = scmp.ne.s32.totalorder %s93, %s94
      %p108 = scmp.eq.s32.totalorder %s23, 3
      %p109 = por %p107, %p108
      %p111 = scmp.ne.s32.totalorder %s94, %s110
      %p112 = scmp.eq.s32.totalorder %s23, 0
      %p113 = por %p111, %p112
      %s114 = ssub.s32 %s24, %s36
      %s115 = ssub.s32 %s25, %s32
      %s116 = sor.u32 %s114, %s115
      %p117 = scmp.eq.s32.totalorder %s116, 0
      %s119 = sadd.s32 %s118, 1
      %s120 = scalar_select %p117, %s118, %s119
      %p123 = pneg %p117
      %p124 = scmp.eq.s32.totalorder %s17, 3
      %p125 = por %p123, %p124
      %p126 = scmp.ne.s32.totalorder %s118, %s121
      %p127 = scmp.eq.s32.totalorder %s17, 0
      %p128 = por %p126, %p127
      %p129 = scmp.ne.s32.totalorder %s118, %s121
      %p130 = scmp.eq.s32.totalorder %s22, 3
      %p131 = por %p129, %p130
      %p132 = scmp.ne.s32.totalorder %s121, %s122
      %p133 = scmp.eq.s32.totalorder %s22, 0
      %p134 = por %p132, %p133
      %p135 = scmp.ne.s32.totalorder %s121, %s122
      %p136 = scmp.eq.s32.totalorder %s23, 3
      %p137 = por %p135, %p136
      %p139 = scmp.ne.s32.totalorder %s122, %s138
      %p140 = scmp.eq.s32.totalorder %s23, 0
      %p141 = por %p139, %p140
      %s142 = ssub.s32 %s24, %s36
      %s143 = ssub.s32 %s25, %s32
      %s144 = sor.u32 %s142, %s143
      %p145 = scmp.eq.s32.totalorder %s144, 0
      %s147 = sadd.s32 %s146, 1
      %s148 = scalar_select %p145, %s146, %s147
      %p151 = pneg %p145
      %p152 = scmp.eq.s32.totalorder %s17, 3
      %p153 = por %p151, %p152
      %p154 = scmp.ne.s32.totalorder %s146, %s149
      %p155 = scmp.eq.s32.totalorder %s17, 0
      %p156 = por %p154, %p155
      %p157 = scmp.ne.s32.totalorder %s146, %s149
      %p158 = scmp.eq.s32.totalorder %s22, 3
      %p159 = por %p157, %p158
      %p160 = scmp.ne.s32.totalorder %s149, %s150
      %p161 = scmp.eq.s32.totalorder %s22, 0
      %p162 = por %p160, %p161
      %p163 = scmp.ne.s32.totalorder %s149, %s150
      %p164 = scmp.eq.s32.totalorder %s23, 3
      %p165 = por %p163, %p164
      %p167 = scmp.ne.s32.totalorder %s150, %s166
      %p168 = scmp.eq.s32.totalorder %s23, 0
      %p169 = por %p167, %p168
      %p170 = scmp.le.s32.totalorder 1, %s17
      %p171 = scmp.lt.s32.totalorder %s17, 5
      %p172 = pnand %p170, %p171
      %p173 = pneg %p172
      // Predicated region
      $region9: #{tpu_custom_call.1} parent=5 // pred_check
        _
      $region10: #{tpu_custom_call.1} parent=5 // pred_check_branch
        %175 = sbr.rel (%p172) target = $region12
      $region11: #{tpu_custom_call.1} parent=5 // pred_region
        %s176 = ssub.s32 %s17, 1
        // Predicated region
        $region13: #{tpu_custom_call.1} parent=11 // pred_check
          %p177 = pneg %p50
        $region14: #{tpu_custom_call.1} parent=11 // pred_check_branch
          %179 = sbr.rel (%p177) target = $region16
        $region15: #{tpu_custom_call.1} parent=11 // pred_region
          _
        $region16: #{tpu_custom_call.1} parent=11 // pred_fallthru
          _
      $region12: #{tpu_custom_call.1} parent=5 // pred_fallthru
        _
      %p180 = scmp.lt.s32.totalorder %s17, 4
      // Predicated region
      $region17: #{tpu_custom_call.1} parent=5 // pred_check
        %p181 = pneg %p180
      $region18: #{tpu_custom_call.1} parent=5 // pred_check_branch
        %183 = sbr.rel (%p181) target = $region20
      $region19: #{tpu_custom_call.1} parent=5 // pred_region
        // Predicated region
        $region21: #{tpu_custom_call.1} parent=19 // pred_check
          %p184 = pneg %p72
        $region22: #{tpu_custom_call.1} parent=19 // pred_check_branch
          %186 = sbr.rel (%p184) target = $region24
        $region23: #{tpu_custom_call.1} parent=19 // pred_region
          %s187 = sand.u32 %s62, 1
          %s188 = sand.u32 %s62, 1
          %s189 = smul.addr %s188, 20
          %s190 = scalar_lea.vmem [#allocation2], %s189
          %s191 = smul.addr %s24, 10
          %s192 = sadd.s32 %s25, %s191
          %s193 = smul.addr %s192, 4
          %s194 = scalar_lea.vmem %s1, %s193
          // Predicated region
          $region25: #{tpu_custom_call.1} parent=23 // pred_check
            _
          $region26: #{tpu_custom_call.1} parent=23 // pred_check_branch
            %196 = sbr.rel (0) target = $region28
          $region27: #{tpu_custom_call.1} parent=23 // pred_region
            // Predicated region
            $region29: #{tpu_custom_call.1} parent=27 // pred_check
              _
            $region30: #{tpu_custom_call.1} parent=27 // pred_check_branch
              %198 = sbr.rel target = $region32
            $region31: #{tpu_custom_call.1} parent=27 // pred_region
              // Predicated region
              $region44: #{tpu_custom_call.1} parent=31 // pred_check
                _
              $region45: #{tpu_custom_call.1} parent=31 // pred_check_branch
                %221 = sbr.rel (0) target = $region47
              $region46: #{tpu_custom_call.1} parent=31 // pred_region
                loop: start=0, step=1, limit=1
                $region48: #{tpu_custom_call.1} parent=46 // loop_pre_header
                  _
                $region49: #{tpu_custom_call.1} parent=46 // loop_header
                  %s223 = sphi 0, %s227
                  %p224 = scmp.ge.s32.totalorder %s223, 1
                  %s228 = sphi %s194, %s194
                  %s229 = sphi %s190, %s190
                $region50: #{tpu_custom_call.1} parent=46 // loop_header_branch
                  %226 = sbr.rel (%p224) target = $region54
                $region51: #{tpu_custom_call.1} parent=46 // loop_body
                  _
                $region52: #{tpu_custom_call.1} parent=46 // loop_footer
                  %s227 = sadd.s32 1, %s223
                $region53: #{tpu_custom_call.1} parent=46 // loop_footer_branch
                  %222 = sbr.rel target = $region49
                $region54: #{tpu_custom_call.1} parent=46 // loop_exit
                  _
                loop: start=0, step=1, limit=1
                $region55: #{tpu_custom_call.1} parent=46 // loop_pre_header
                  _
                $region56: #{tpu_custom_call.1} parent=46 // loop_header
                  %s232 = sphi 0, %s236
                  %p233 = scmp.ge.s32.totalorder %s232, 1
                  %s237 = sphi %s194, %s194
                  %s238 = sphi %s190, %s190
                $region57: #{tpu_custom_call.1} parent=46 // loop_header_branch
                  %235 = sbr.rel (%p233) target = $region61
                $region58: #{tpu_custom_call.1} parent=46 // loop_body
                  %v239 = vld [vmem:[%s237] sm:$0xf]
                  %240 = vst [vmem:[%s238] sm:$0xf] %v239
                  %v241 = vld [vmem:[%s237 + $0x8] sm:$0xf]
                  %242 = vst [vmem:[%s238 + $0x4] sm:$0xf] %v241
                  %v243 = vld [vmem:[%s237 + $0x10] sm:$0xf]
                  %244 = vst [vmem:[%s238 + $0x8] sm:$0xf] %v243
                  %v245 = vld [vmem:[%s237 + $0x18] sm:$0xf]
                  %246 = vst [vmem:[%s238 + $0xc] sm:$0xf] %v245
                  %v247 = vld [vmem:[%s237 + $0x20] sm:$0xf]
                  %248 = vst [vmem:[%s238 + $0x10] sm:$0xf] %v247
                $region59: #{tpu_custom_call.1} parent=46 // loop_footer
                  %s236 = sadd.s32 1, %s232
                $region60: #{tpu_custom_call.1} parent=46 // loop_footer_branch
                  %231 = sbr.rel target = $region56
                $region61: #{tpu_custom_call.1} parent=46 // loop_exit
                  _
              $region47: #{tpu_custom_call.1} parent=31 // pred_fallthru
                _
            $region32: #{tpu_custom_call.1} parent=27 // pred_fallthru
              _
            // Predicated region
            $region33: #{tpu_custom_call.1} parent=27 // pred_check
              _
            $region34: #{tpu_custom_call.1} parent=27 // pred_check_branch
              %200 = sbr.rel (0) target = $region36
            $region35: #{tpu_custom_call.1} parent=27 // pred_region
              loop: start=0, step=1, limit=1
              $region37: #{tpu_custom_call.1} parent=35 // loop_pre_header
                _
              $region38: #{tpu_custom_call.1} parent=35 // loop_header
                %s203 = sphi 0, %s207
                %p204 = scmp.ge.s32.totalorder %s203, 1
                %s208 = sphi %s194, %s194
                %s209 = sphi %s190, %s190
              $region39: #{tpu_custom_call.1} parent=35 // loop_header_branch
                %206 = sbr.rel (%p204) target = $region43
              $region40: #{tpu_custom_call.1} parent=35 // loop_body
                %v210 = vld [vmem:[%s208] sm:$0xf]
                %211 = vst [vmem:[%s209] sm:$0xf] %v210
                %v212 = vld [vmem:[%s208 + $0x8] sm:$0xf]
                %213 = vst [vmem:[%s209 + $0x4] sm:$0xf] %v212
                %v214 = vld [vmem:[%s208 + $0x10] sm:$0xf]
                %215 = vst [vmem:[%s209 + $0x8] sm:$0xf] %v214
                %v216 = vld [vmem:[%s208 + $0x18] sm:$0xf]
                %217 = vst [vmem:[%s209 + $0xc] sm:$0xf] %v216
                %v218 = vld [vmem:[%s208 + $0x20] sm:$0xf]
                %219 = vst [vmem:[%s209 + $0x10] sm:$0xf] %v218
              $region41: #{tpu_custom_call.1} parent=35 // loop_footer
                %s207 = sadd.s32 1, %s203
              $region42: #{tpu_custom_call.1} parent=35 // loop_footer_branch
                %202 = sbr.rel target = $region38
              $region43: #{tpu_custom_call.1} parent=35 // loop_exit
                _
            $region36: #{tpu_custom_call.1} parent=27 // pred_fallthru
              _
          $region28: #{tpu_custom_call.1} parent=23 // pred_fallthru
            _
          %249 = vnop
        $region24: #{tpu_custom_call.1} parent=19 // pred_fallthru
          _
      $region20: #{tpu_custom_call.1} parent=5 // pred_fallthru
        _
      %p250 = scmp.le.s32.totalorder 1, %s17
      %p251 = scmp.lt.s32.totalorder %s17, 5
      %p252 = pnand %p250, %p251
      %p253 = pneg %p252
      // Predicated region
      $region62: #{tpu_custom_call.1} parent=5 // pred_check
        _
      $region63: #{tpu_custom_call.1} parent=5 // pred_check_branch
        %255 = sbr.rel (%p252) target = $region65
      $region64: #{tpu_custom_call.1} parent=5 // pred_region
        %s256 = ssub.s32 %s17, 1
        %s257 = sand.u32 %s65, 1
        %s258 = sand.u32 %s65, 1
        %s259 = smul.addr %s258, 20
        %s260 = scalar_lea.vmem [#allocation2], %s259
        // Predicated region
        $region66: #{tpu_custom_call.1} parent=64 // pred_check
          %p261 = pneg %p78
        $region67: #{tpu_custom_call.1} parent=64 // pred_check_branch
          %263 = sbr.rel (%p261) target = $region69
        $region68: #{tpu_custom_call.1} parent=64 // pred_region
          _
        $region69: #{tpu_custom_call.1} parent=64 // pred_fallthru
          _
        %p264 = pneg %p50
        %p265 = pneg %p47
        %s266 = sand.u32 %s65, 1
        %s267 = sand.u32 %s65, 1
        %s268 = smul.addr %s267, 20
        %s269 = scalar_lea.vmem [#allocation2], %s268
        %p270 = pneg %p78
        %p271 = pneg %p75
        %p272 = pneg %p106
        %p273 = pneg %p103
        %s274 = sand.u32 %s93, 1
        %s275 = scalar_lea.sflag [#allocation4], %s274
        %s276 = sand.u32 %s93, 1
        %s277 = smul.addr %s276, 4
        %s278 = scalar_lea.vmem [#allocation3], %s277
        %p279 = pneg %p134
        %p280 = pneg %p131
        %s281 = sand.u32 %s22, 1
        %s282 = scalar_lea.sflag [#allocation6], %s281
        %s283 = sand.u32 %s121, 1
        %s284 = smul.addr %s283, 8
        %s285 = scalar_lea.vmem [#allocation5], %s284
        %p286 = pneg %p162
        %p287 = pneg %p159
        %s288 = sand.u32 %s22, 1
        %s289 = scalar_lea.sflag [#allocation6], %s288
        %s290 = sand.u32 %s149, 1
        %s291 = smul.addr %s290, 8
        %s292 = scalar_lea.vmem [#allocation7], %s291
        %v294 = vld [vmem:[%s0] sm:$0xf]
        %v295 = vld [vmem:[%s260] sm:$0xf]
        %v296 = vld [vmem:[%s260 + $0x4] sm:$0xf]
        %v297 = vld [vmem:[%s260 + $0x8] sm:$0xf]
        %v298 = vld [vmem:[%s260 + $0xc] sm:$0xf]
        %v299 = vld [vmem:[%s260 + $0x10] sm:$0x3]
        %v305 = vunpack.c.l.b16 %v295
        %v306 = vunpack.c.l.b16 %v296
        %v307 = vunpack.c.l.b16 %v297
        %v308 = vunpack.c.l.b16 %v298
        %v309 = vunpack.c.l.b16 %v299
        %v310 = vpack.c.b16 %v306, %v305
        %v311 = vpack.c.b16 %v308, %v307
        %v312 = vpack.c.b16 %v309, %v309
        %vm315 = vcmask 293888
        %v317 = vsel %vm315, %v294, 0
        %vm319 = vcmask 1041408
        %v321 = vsel %vm319, %v312, 0
        %323 = vmatprep.subr.bf16.mxu0 0
        %324 = vmatpush1.bf16.msra.mxu0 %v310
        %325 = vmatprep.subr.bf16.mxu0 0
        %326 = vmatpush1.bf16.msra.mxu0 %v311
        %327 = vmatprep.subr.bf16.mxu0 0
        %328 = vmatpush1.bf16.msra.mxu0 %v321
        %329 = vmatprep.subr.bf16.mxu0 0
        %330 = vmatpush1.bf16.msra.mxu0 0
        %331 = vmatprep.subr.bf16.mxu0 0
        %332 = vmatpush1.bf16.msra.mxu0 0
        %333 = vmatprep.subr.bf16.mxu0 0
        %334 = vmatpush1.bf16.msra.mxu0 0
        %335 = vmatprep.subr.bf16.mxu0 0
        %336 = vmatpush1.bf16.msra.mxu0 0
        %337 = vmatprep.subr.bf16.mxu0 0
        %338 = vmatpush1.bf16.msra.mxu0 0
        %339 = vmatprep.subr.bf16.mxu0 0
        %340 = vmatpush1.bf16.msra.mxu0 0
        %341 = vmatprep.subr.bf16.mxu0 0
        %342 = vmatpush1.bf16.msra.mxu0 0
        %343 = vmatprep.subr.bf16.mxu0 0
        %344 = vmatpush1.bf16.msra.mxu0 0
        %345 = vmatprep.subr.bf16.mxu0 0
        %346 = vmatpush1.bf16.msra.mxu0 0
        %347 = vmatprep.subr.bf16.mxu0 0
        %348 = vmatpush1.bf16.msra.mxu0 0
        %349 = vmatprep.subr.bf16.mxu0 0
        %350 = vmatpush1.bf16.msra.mxu0 0
        %351 = vmatprep.subr.bf16.mxu0 0
        %352 = vmatpush1.bf16.msra.mxu0 0
        %353 = vmatprep.subr.bf16.mxu0 0
        %354 = vmatpush1.bf16.msra.mxu0 0
        %355 = vmatprep.mubr.bf16.mxu0 0
        %356 = vmatmul.mubr.bf16.gmra.mrb[0].mxu0 %v317
        %v357 = vpop.f32.mrb[0].mxu0
        %v358 = vadd.f32 0.0, %v357
        %v359 = vpop.f32.mrb[0].mxu0
        %v360 = vpop.f32.mrb[0].mxu0
        %v361 = vpop.f32.mrb[0].mxu0
        %362 = vdwg.mxu0
        %v363 = vpack.c.bf16 %v358, %v358
        %364 = vst [vmem:[%s278] sm:$0xf] %v363
        %v365 = vadd.f32 %v358, 0.0
        %v366 = vmul.f32 %v358, %v358
        %v367 = vadd.f32 %v366, 0.0
        %368 = vst [vmem:[%s285] sm:$0xff] %v365
        %369 = vst [vmem:[%s292] sm:$0xff] %v367
        %s370 = sand.u32 %s93, 1
        %s371 = scalar_lea.sflag [#allocation4], %s370
        %s372 = sand.u32 %s93, 1
        %s373 = smul.addr %s372, 4
        %s374 = scalar_lea.vmem [#allocation3], %s373
        %s375 = sand.u32 %s22, 1
        %s376 = scalar_lea.sflag [#allocation6], %s375
        %s377 = sand.u32 %s121, 1
        %s378 = smul.addr %s377, 8
        %s379 = scalar_lea.vmem [#allocation5], %s378
        %s380 = sand.u32 %s22, 1
        %s381 = scalar_lea.sflag [#allocation6], %s380
        %s382 = sand.u32 %s149, 1
        %s383 = smul.addr %s382, 8
        %s384 = scalar_lea.vmem [#allocation7], %s383
        // Predicated region
        $region70: #{tpu_custom_call.1} parent=64 // pred_check
          %p385 = pneg %p103
        $region71: #{tpu_custom_call.1} parent=64 // pred_check_branch
          %387 = sbr.rel (%p385) target = $region73
        $region72: #{tpu_custom_call.1} parent=64 // pred_region
          %s389 = ssub.s32 64, 64
          %390 = vsyncadd %s371, %s389
          %s391 = smul.addr %s26, 2
          %s392 = sadd.s32 %s27, %s391
          %s393 = smul.addr %s392, 64
          %s394 = scalar_lea.hbm %s2, %s393
          %s396 = sshll.u32 %s374, 4
          %s397 = int_to_ptr.vmem [resolvable:$true] %s396
          %399 = dma.vmem_to_hbm [thread:$0]  %s397, 64, %s394, %s371
        $region73: #{tpu_custom_call.1} parent=64 // pred_fallthru
          _
        // Predicated region
        $region74: #{tpu_custom_call.1} parent=64 // pred_check
          %p400 = pneg %p131
        $region75: #{tpu_custom_call.1} parent=64 // pred_check_branch
          %402 = sbr.rel (%p400) target = $region77
        $region76: #{tpu_custom_call.1} parent=64 // pred_region
          %s404 = ssub.s32 128, 128
          %405 = vsyncadd %s376, %s404
          %s406 = smul.addr %s26, 2
          %s407 = sadd.s32 %s27, %s406
          %s408 = smul.addr %s407, 128
          %s409 = scalar_lea.hbm %s3, %s408
          %s411 = sshll.u32 %s379, 4
          %s412 = int_to_ptr.vmem [resolvable:$true] %s411
          %414 = dma.vmem_to_hbm [thread:$0]  %s412, 128, %s409, %s376
        $region77: #{tpu_custom_call.1} parent=64 // pred_fallthru
          _
        // Predicated region
        $region78: #{tpu_custom_call.1} parent=64 // pred_check
          %p415 = pneg %p159
        $region79: #{tpu_custom_call.1} parent=64 // pred_check_branch
          %417 = sbr.rel (%p415) target = $region81
        $region80: #{tpu_custom_call.1} parent=64 // pred_region
          %s419 = ssub.s32 128, 128
          %420 = vsyncadd %s381, %s419
          %s421 = smul.addr %s26, 2
          %s422 = sadd.s32 %s27, %s421
          %s423 = smul.addr %s422, 128
          %s424 = scalar_lea.hbm %s4, %s423
          %s426 = sshll.u32 %s384, 4
          %s427 = int_to_ptr.vmem [resolvable:$true] %s426
          %429 = dma.vmem_to_hbm [thread:$0]  %s427, 128, %s424, %s381
        $region81: #{tpu_custom_call.1} parent=64 // pred_fallthru
          _
      $region65: #{tpu_custom_call.1} parent=5 // pred_fallthru
        _
      %p430 = scmp.le.s32.totalorder 2, %s17
      // Predicated region
      $region82: #{tpu_custom_call.1} parent=5 // pred_check
        %p431 = pneg %p430
      $region83: #{tpu_custom_call.1} parent=5 // pred_check_branch
        %433 = sbr.rel (%p431) target = $region85
      $region84: #{tpu_custom_call.1} parent=5 // pred_region
        %s434 = ssub.s32 %s17, 2
        // Predicated region
        $region86: #{tpu_custom_call.1} parent=84 // pred_check
          %p435 = pneg %p109
        $region87: #{tpu_custom_call.1} parent=84 // pred_check_branch
          %437 = sbr.rel (%p435) target = $region89
        $region88: #{tpu_custom_call.1} parent=84 // pred_region
          %s438 = sand.u32 %s94, 1
          %s439 = scalar_lea.sflag [#allocation4], %s438
          %s440 = sand.u32 %s94, 1
          %s441 = smul.addr %s440, 4
          %s442 = scalar_lea.vmem [#allocation3], %s441
          %443 = dma.done %s439, 64
        $region89: #{tpu_custom_call.1} parent=84 // pred_fallthru
          _
        // Predicated region
        $region90: #{tpu_custom_call.1} parent=84 // pred_check
          %p444 = pneg %p137
        $region91: #{tpu_custom_call.1} parent=84 // pred_check_branch
          %446 = sbr.rel (%p444) target = $region93
        $region92: #{tpu_custom_call.1} parent=84 // pred_region
          %s447 = sand.u32 %s23, 1
          %s448 = scalar_lea.sflag [#allocation6], %s447
          %s449 = sand.u32 %s122, 1
          %s450 = smul.addr %s449, 8
          %s451 = scalar_lea.vmem [#allocation5], %s450
          %452 = dma.done %s448, 128
        $region93: #{tpu_custom_call.1} parent=84 // pred_fallthru
          _
        // Predicated region
        $region94: #{tpu_custom_call.1} parent=84 // pred_check
          %p453 = pneg %p165
        $region95: #{tpu_custom_call.1} parent=84 // pred_check_branch
          %455 = sbr.rel (%p453) target = $region97
        $region96: #{tpu_custom_call.1} parent=84 // pred_region
          %s456 = sand.u32 %s23, 1
          %s457 = scalar_lea.sflag [#allocation6], %s456
          %s458 = sand.u32 %s150, 1
          %s459 = smul.addr %s458, 8
          %s460 = scalar_lea.vmem [#allocation7], %s459
          %461 = dma.done %s457, 128
        $region97: #{tpu_custom_call.1} parent=84 // pred_fallthru
          _
      $region85: #{tpu_custom_call.1} parent=5 // pred_fallthru
        _
    $region6: #{tpu_custom_call.1} parent=1 // loop_footer
      %s21 = sadd.s32 1, %s17
    $region7: #{tpu_custom_call.1} parent=1 // loop_footer_branch
      %16 = sbr.rel target = $region3
    $region8: #{tpu_custom_call.1} parent=1 // loop_exit
      _
    %462 = vsyncpa [#allocation4], 1
    %s463 = scalar_lea.sflag [#allocation4], 1
    %464 = vsyncpa %s463, 1
    %465 = vsyncpa [#allocation6], 1
    %s466 = scalar_lea.sflag [#allocation6], 1
    %467 = vsyncpa %s466, 1

</llo_original>
